<compile_context>
chip_gen: v6e
topology: v6e:2x2x1
jax: 0.10.0
libtpu: 0.0.40
codegen_flags: <defaults>
</compile_context>

<pallas_src>
import jax
import jax.numpy as jnp
from jax import lax
from jax.experimental import pallas as pl
from jax.experimental.pallas import tpu as pltpu


def _round_up(x, m):
    return (x + m - 1) // m * m


def _vq_kernel(x_ref, cb_ref, wsq_ref, idx_ref, sse_ref):
    x = x_ref[...]                        # (TILE_N, D) f32
    w = cb_ref[...]                       # (K, D) f32, resident across the grid
    w_sq = wsq_ref[...]                   # (1, K) f32, precomputed in wrapper
    tn = x.shape[0]
    k = w.shape[0]

    # distances[i, j] = ||x_i||^2 - 2 x_i.w_j + ||w_j||^2 ; the per-row ||x_i||^2
    # constant cancels in the argmax, so work with neg = 2 x.w - ||w||^2 = ||x||^2 - dist.
    xw = lax.dot_general(x, w, (((1,), (1,)), ((), ())),
                         preferred_element_type=jnp.float32)      # (TILE_N, K)
    neg = 2.0 * xw - w_sq                                         # (TILE_N, K)

    # argmax with first-max-wins tie behavior (matches torch.argmax)
    m = jnp.max(neg, axis=-1, keepdims=True)                      # (TILE_N, 1)
    iota = lax.broadcasted_iota(jnp.int32, (tn, k), 1)
    idx = jnp.min(jnp.where(neg == m, iota, jnp.int32(k)), axis=-1)  # (TILE_N,)

    # per-row squared error to the selected code, for free from the row max:
    # ||x - w_idx||^2 = ||x||^2 - (2 x.w_idx - ||w_idx||^2) = ||x||^2 - max(neg)
    x_sq = jnp.sum(x * x, axis=1)                                 # (TILE_N,)
    sse = x_sq - m[:, 0]                                          # (TILE_N,)

    # lane-dense emission (N on the lane axis); final reduce/normalize in wrapper
    idx_ref[...] = idx[None, :]                                   # (1, TILE_N) int32
    sse_ref[...] = sse[None, :]                                   # (1, TILE_N) f32


def vector_quantize(latent, codebook, temperature, beta, tile_n=2048):
    """latent: (B, S, D) f32, codebook: (K, D) f32, temperature: () (unused on eval path)."""
    del temperature  # eval-forward outputs are temperature-invariant (see header)

    b, s, d = latent.shape
    k = codebook.shape[0]
    n = b * s

    # Tile selection:
    #  - tiny N: one full-array tile (block == full dims, always layout-legal)
    #  - larger N: 128-multiple rows, capped so the grid has >= 2 tiles
    #    (keeps both v7x TensorCores busy via the "parallel" grid axis).
    if n <= 1024:
        tile_n = n
    else:
        tile_n = min(_round_up(tile_n, 128), _round_up(pl.cdiv(n, 2), 128))
    num_tiles = pl.cdiv(n, tile_n)

    flat = latent.reshape(n, d).astype(jnp.float32)
    cb = codebook.astype(jnp.float32)
    w_sq = jnp.sum(cb * cb, axis=1)[None, :]          # (1, K), hoisted out of the kernel

    cost = pl.CostEstimate(
        flops=2 * n * k * d,                          # one distance matmul
        transcendentals=0,
        bytes_accessed=n * d * 4 + k * d * 4 + k * 4 + n * 8,
    )

    idx2d, sse2d = pl.pallas_call(
        _vq_kernel,
        grid=(num_tiles,),
        out_shape=(
            jax.ShapeDtypeStruct((1, n), jnp.int32),    # indices, lane-dense
            jax.ShapeDtypeStruct((1, n), jnp.float32),  # per-row SSE, lane-dense
        ),
        in_specs=[
            pl.BlockSpec((tile_n, d), lambda i: (i, 0)),   # latent tile (partial tail OK)
            pl.BlockSpec((k, d), lambda i: (0, 0)),        # codebook (resident)
            pl.BlockSpec((1, k), lambda i: (0, 0)),        # ||w||^2 (resident)
        ],
        out_specs=(
            pl.BlockSpec((1, tile_n), lambda i: (0, i)),
            pl.BlockSpec((1, tile_n), lambda i: (0, i)),
        ),
        compiler_params=pltpu.CompilerParams(
            dimension_semantics=("parallel",),
            vmem_limit_bytes=16 * 1024 * 1024,
        ),
        cost_estimate=cost,
    )(flat, cb, w_sq)

    indices = idx2d[0]                                   # (N,) int32
    quant = jnp.take(cb, indices, axis=0)                # (N, D) == codebook[idx]
    # quantized = latent + (quantized - latent).detach()  (straight-through forward value)
    quantized = (flat + lax.stop_gradient(quant - flat)).reshape(b, s, d)
    # loss = codebook_loss + beta * commitment_loss = (1 + beta) * MSE
    loss = jnp.float32(1.0 + beta) * (jnp.sum(sse2d[0]) / jnp.float32(n * d))
    return quantized, loss, indices


def _reference(latent, codebook, temperature, beta):
    """Pure-JAX transcription of the PyTorch forward (softmax + straight-through)."""
    b, s, d = latent.shape
    k = codebook.shape[0]
    flat = latent.reshape(-1, d)
    dist = (jnp.sum(flat ** 2, axis=1, keepdims=True)
            - 2.0 * flat @ codebook.T
            + jnp.sum(codebook ** 2, axis=1))
    scaled = dist / max(float(temperature), 1e-5)
    soft = jax.nn.softmax(-scaled, axis=-1)
    idx = jnp.argmax(soft, axis=-1).astype(jnp.int32)
    hard = jax.nn.one_hot(idx, k, dtype=jnp.float32)
    assign = (hard + soft) - soft
    quant = assign @ codebook
    mse = jnp.mean((flat - quant) ** 2)
    loss = (1.0 + beta) * mse
    quantized = (flat + (quant - flat)).reshape(b, s, d)
    return quantized, loss, idx


if __name__ == "__main__":
    # Module hyperparameters (small, deterministic)
    num_tokens = 128     # K
    latent_dim = 32      # D
    beta = 0.25
    temp_init = 1.0

    B, S = 2, 8

    key = jax.random.PRNGKey(0)
    k_lat, k_cb = jax.random.split(key)
    latent = jax.random.normal(k_lat, (B, S, latent_dim), dtype=jnp.float32)
    # nn.init.uniform_(codebook.weight, -1/num_tokens, 1/num_tokens)
    codebook = jax.random.uniform(
        k_cb, (num_tokens, latent_dim), dtype=jnp.float32,
        minval=-1.0 / num_tokens, maxval=1.0 / num_tokens)

    quantized, loss, indices = vector_quantize(latent, codebook, temp_init, beta)
    jax.block_until_ready((quantized, loss, indices))

    # Sanity check against a pure-JAX reference of the original forward math.
    q_ref, l_ref, i_ref = _reference(latent, codebook, temp_init, beta)
    assert quantized.shape == (B, S, latent_dim)
    assert indices.shape == (B * S,)
    assert jnp.array_equal(indices, i_ref)
    assert jnp.allclose(quantized, q_ref, atol=1e-5, rtol=1e-5)
    assert jnp.allclose(loss, l_ref, atol=1e-5, rtol=1e-4)

    print("KERNEL_OK")
</pallas_src>

<mosaic_0001>
module attributes {stable_mosaic.version = 11 : i64} {
  func.func @_vq_kernel(%arg0: i32, %arg1: memref<16x32xf32, #tpu.memory_space<vmem>>, %arg2: memref<128x32xf32, #tpu.memory_space<vmem>>, %arg3: memref<1x128xf32, #tpu.memory_space<vmem>>, %arg4: memref<1x16xi32, #tpu.memory_space<vmem>>, %arg5: memref<1x16xf32, #tpu.memory_space<vmem>>) attributes {dimension_semantics = [#tpu.dimension_semantics<parallel>], iteration_bounds = array<i64: 1>, scalar_prefetch = 0 : i64, scratch_operands = 0 : i64, tpu.core_type = #tpu.core_type<tc>, window_params = [{transform_indices = @transform_0, window_bounds = array<i64: 16, 32>}, {pipeline_mode = #tpu.pipeline_mode<synchronous>, transform_indices = @transform_1, window_bounds = array<i64: 128, 32>}, {pipeline_mode = #tpu.pipeline_mode<synchronous>, transform_indices = @transform_2, window_bounds = array<i64: 1, 128>}, {transform_indices = @transform_3, window_bounds = array<i64: 1, 16>}, {transform_indices = @transform_4, window_bounds = array<i64: 1, 16>}]} {
    %c0 = arith.constant 0 : index
    %c0_0 = arith.constant 0 : index
    %0 = vector.load %arg1[%c0, %c0_0] : memref<16x32xf32, #tpu.memory_space<vmem>>, vector<16x32xf32>
    %c0_1 = arith.constant 0 : index
    %c0_2 = arith.constant 0 : index
    %1 = vector.load %arg2[%c0_1, %c0_2] : memref<128x32xf32, #tpu.memory_space<vmem>>, vector<128x32xf32>
    %c0_3 = arith.constant 0 : index
    %c0_4 = arith.constant 0 : index
    %2 = vector.load %arg3[%c0_3, %c0_4] : memref<1x128xf32, #tpu.memory_space<vmem>>, vector<1x128xf32>
    %cst = arith.constant dense<0.000000e+00> : vector<16x128xf32>
    %3 = tpu.matmul %0, %1, %cst {dimension_numbers = #tpu.dot_dimension_numbers<[1], [1], [0], [0], [0, 0, 1, 0], [], []>} : vector<16x32xf32>, vector<128x32xf32>, vector<16x128xf32> -> vector<16x128xf32>
    %cst_5 = arith.constant 2.000000e+00 : f32
    %4 = vector.broadcast %cst_5 : f32 to vector<16x128xf32>
    %5 = arith.mulf %4, %3 : vector<16x128xf32>
    %6 = vector.broadcast %2 : vector<1x128xf32> to vector<16x128xf32>
    %7 = arith.subf %5, %6 : vector<16x128xf32>
    %cst_6 = arith.constant dense<0xFF800000> : vector<16xf32>
    %8 = vector.multi_reduction <maximumf>, %7, %cst_6 [1] : vector<16x128xf32> to vector<16xf32>
    %9 = vector.shape_cast %8 : vector<16xf32> to vector<16x1xf32>
    %10 = tpu.iota {dimensions = array<i32: 1>} : vector<16x128xi32>
    %11 = vector.broadcast %9 : vector<16x1xf32> to vector<16x128xf32>
    %12 = arith.cmpf oeq, %7, %11 : vector<16x128xf32>
    %c128_i32 = arith.constant 128 : i32
    %13 = vector.broadcast %c128_i32 : i32 to vector<16x128xi32>
    %14 = arith.select %12, %10, %13 : vector<16x128xi1>, vector<16x128xi32>
    %cst_7 = arith.constant dense<2147483647> : vector<16xi32>
    %15 = vector.multi_reduction <minsi>, %14, %cst_7 [1] : vector<16x128xi32> to vector<16xi32>
    %16 = arith.mulf %0, %0 : vector<16x32xf32>
    %cst_8 = arith.constant dense<0.000000e+00> : vector<16xf32>
    %17 = vector.multi_reduction <add>, %16, %cst_8 [1] : vector<16x32xf32> to vector<16xf32>
    %18 = vector.shape_cast %9 : vector<16x1xf32> to vector<16xf32>
    %19 = arith.subf %17, %18 : vector<16xf32>
    %20 = vector.shape_cast %15 : vector<16xi32> to vector<1x16xi32>
    %c0_9 = arith.constant 0 : index
    %c0_10 = arith.constant 0 : index
    %21 = vector.load %arg4[%c0_9, %c0_10] : memref<1x16xi32, #tpu.memory_space<vmem>>, vector<1x16xi32>
    tpu.vector_store %arg4[%c0_9, %c0_10], %20 {strides = array<i32>} : memref<1x16xi32, #tpu.memory_space<vmem>>, vector<1x16xi32>,
    %22 = vector.shape_cast %19 : vector<16xf32> to vector<1x16xf32>
    %c0_11 = arith.constant 0 : index
    %c0_12 = arith.constant 0 : index
    %23 = vector.load %arg5[%c0_11, %c0_12] : memref<1x16xf32, #tpu.memory_space<vmem>>, vector<1x16xf32>
    tpu.vector_store %arg5[%c0_11, %c0_12], %22 {strides = array<i32>} : memref<1x16xf32, #tpu.memory_space<vmem>>, vector<1x16xf32>,
    return
  }
  func.func @transform_0(%arg0: i32) -> (i32, i32) {
    %c0_i32 = arith.constant 0 : i32
    %c0_i32_0 = arith.constant 0 : i32
    return %arg0, %c0_i32 : i32, i32
  }
  func.func @transform_1(%arg0: i32) -> (i32, i32) {
    %c0_i32 = arith.constant 0 : i32
    %c0_i32_0 = arith.constant 0 : i32
    %c0_i32_1 = arith.constant 0 : i32
    return %c0_i32, %c0_i32_0 : i32, i32
  }
  func.func @transform_2(%arg0: i32) -> (i32, i32) {
    %c0_i32 = arith.constant 0 : i32
    %c0_i32_0 = arith.constant 0 : i32
    %c0_i32_1 = arith.constant 0 : i32
    return %c0_i32, %c0_i32_0 : i32, i32
  }
  func.func @transform_3(%arg0: i32) -> (i32, i32) {
    %c0_i32 = arith.constant 0 : i32
    %c0_i32_0 = arith.constant 0 : i32
    return %c0_i32, %arg0 : i32, i32
  }
  func.func @transform_4(%arg0: i32) -> (i32, i32) {
    %c0_i32 = arith.constant 0 : i32
    %c0_i32_0 = arith.constant 0 : i32
    return %c0_i32, %arg0 : i32, i32
  }
}

</mosaic_0001>

<llo_original>
// kernel: tpu_custom_call.1
$region0: #{tpu_custom_call.1}
  #allocation0 [shape = 'u32[]', space=smem, size = 0x4, offset = 0x4, fixed_abs, tag = 'smem constant byte address 0x4 - core index']
  #allocation1 [shape = 'u32[144,128]{1,0:T(1,128)}', space=vmem, size = 0x12000, scoped, tag = 'internal scratch']
  %s0 = inlined_call_operand.vmem [shape: f32[16,32], index: 0, kind: input, shape index: {}]
  %s1 = inlined_call_operand.vmem [shape: f32[128,32], index: 1, kind: input, shape index: {}]
  %s2 = inlined_call_operand.vmem [shape: f32[1,128], index: 2, kind: input, shape index: {}]
  %s3 = inlined_call_operand.hbm [shape: s32[1,16], index: 3, kind: output, shape index: {0}]
  %s4 = inlined_call_operand.hbm [shape: f32[1,16], index: 4, kind: output, shape index: {1}]
  %5 = xla_tuple %s3, %s4
  %s6 = sld [smem:[#allocation0]]
  $region30: #{tpu_custom_call.1} parent=0
    _
  %s8 = ssub.s32 1, %s6
  %s9 = scalar_select 0, %s8, %s6
  $region1: #{tpu_custom_call.1} parent=0
    #allocation2 [shape = 'u8[512]{0}', space=vmem, size = 0x400, scoped, tag = 'output window, operand 0, single buffered']
    #allocation3 [shape = 's32[1]{0}', space=sflag, size = 0x4, scoped, tag = 'scoped memory for tpu_custom_call.1']
    #allocation4 [shape = 'u8[512]{0}', space=vmem, size = 0x400, scoped, tag = 'output window, operand 1, single buffered']
    #allocation5 [shape = 's32[1]{0}', space=sflag, size = 0x4, scoped, tag = 'scoped memory for tpu_custom_call.1']
    %10 = vsyncpa [#allocation3], 0
    %11 = vsyncpa [#allocation5], 0
    // Predicated region
    $region2: #{tpu_custom_call.1} parent=1 // pred_check
      _
    $region3: #{tpu_custom_call.1} parent=1 // pred_check_branch
      %13 = sbr.rel (0) target = $region5
    $region4: #{tpu_custom_call.1} parent=1 // pred_region
      _
    $region5: #{tpu_custom_call.1} parent=1 // pred_fallthru
      _
    // Predicated region
    $region6: #{tpu_custom_call.1} parent=1 // pred_check
      _
    $region7: #{tpu_custom_call.1} parent=1 // pred_check_branch
      %15 = sbr.rel (0) target = $region9
    $region8: #{tpu_custom_call.1} parent=1 // pred_region
      _
    $region9: #{tpu_custom_call.1} parent=1 // pred_fallthru
      _
    // Predicated region
    $region10: #{tpu_custom_call.1} parent=1 // pred_check
      _
    $region11: #{tpu_custom_call.1} parent=1 // pred_check_branch
      %17 = sbr.rel (0) target = $region13
    $region12: #{tpu_custom_call.1} parent=1 // pred_region
      _
    $region13: #{tpu_custom_call.1} parent=1 // pred_fallthru
      _
    %v18 = vld [vmem:[%s0] sm:$0xff]
    %v19 = vld [vmem:[%s0 + $0x8] sm:$0xff]
    %v20 = vld [vmem:[%s1] sm:$0xff]
    %v21 = vld [vmem:[%s1 + $0x8] sm:$0xff]
    %v22 = vld [vmem:[%s1 + $0x10] sm:$0xff]
    %v23 = vld [vmem:[%s1 + $0x18] sm:$0xff]
    %v24 = vld [vmem:[%s1 + $0x20] sm:$0xff]
    %v25 = vld [vmem:[%s1 + $0x28] sm:$0xff]
    %v26 = vld [vmem:[%s1 + $0x30] sm:$0xff]
    %v27 = vld [vmem:[%s1 + $0x38] sm:$0xff]
    %v28 = vld [vmem:[%s1 + $0x40] sm:$0xff]
    %v29 = vld [vmem:[%s1 + $0x48] sm:$0xff]
    %v30 = vld [vmem:[%s1 + $0x50] sm:$0xff]
    %v31 = vld [vmem:[%s1 + $0x58] sm:$0xff]
    %v32 = vld [vmem:[%s1 + $0x60] sm:$0xff]
    %v33 = vld [vmem:[%s1 + $0x68] sm:$0xff]
    %v34 = vld [vmem:[%s1 + $0x70] sm:$0xff]
    %v35 = vld [vmem:[%s1 + $0x78] sm:$0xff]
    %v36 = vld [vmem:[%s2] sm:$0x1]
    %vm37 = vcmask 261120
    %v39 = vsel %vm37, %v18, 0
    %v42 = vsel %vm37, %v19, 0
    %v45 = vsel %vm37, %v20, 0
    %v48 = vsel %vm37, %v21, 0
    %v51 = vsel %vm37, %v22, 0
    %v54 = vsel %vm37, %v23, 0
    %v57 = vsel %vm37, %v24, 0
    %v60 = vsel %vm37, %v25, 0
    %v63 = vsel %vm37, %v26, 0
    %v66 = vsel %vm37, %v27, 0
    %v69 = vsel %vm37, %v28, 0
    %v72 = vsel %vm37, %v29, 0
    %v75 = vsel %vm37, %v30, 0
    %v78 = vsel %vm37, %v31, 0
    %v81 = vsel %vm37, %v32, 0
    %v84 = vsel %vm37, %v33, 0
    %v87 = vsel %vm37, %v34, 0
    %v90 = vsel %vm37, %v35, 0
    %92 = vmatprep.subr.mxu0 0.0
    %93 = vmatpush1.xpose.msra.mxu0 %v90
    %94 = vmatprep.subr.mxu0 0.0
    %95 = vmatpush1.xpose.msra.mxu0 %v87
    %96 = vmatprep.subr.mxu0 0.0
    %97 = vmatpush1.xpose.msra.mxu0 %v84
    %98 = vmatprep.subr.mxu0 0.0
    %99 = vmatpush1.xpose.msra.mxu0 %v81
    %100 = vmatprep.subr.mxu0 0.0
    %101 = vmatpush1.xpose.msra.mxu0 %v78
    %102 = vmatprep.subr.mxu0 0.0
    %103 = vmatpush1.xpose.msra.mxu0 %v75
    %104 = vmatprep.subr.mxu0 0.0
    %105 = vmatpush1.xpose.msra.mxu0 %v72
    %106 = vmatprep.subr.mxu0 0.0
    %107 = vmatpush1.xpose.msra.mxu0 %v69
    %108 = vmatprep.subr.mxu0 0.0
    %109 = vmatpush1.xpose.msra.mxu0 %v66
    %110 = vmatprep.subr.mxu0 0.0
    %111 = vmatpush1.xpose.msra.mxu0 %v63
    %112 = vmatprep.subr.mxu0 0.0
    %113 = vmatpush1.xpose.msra.mxu0 %v60
    %114 = vmatprep.subr.mxu0 0.0
    %115 = vmatpush1.xpose.msra.mxu0 %v57
    %116 = vmatprep.subr.mxu0 0.0
    %117 = vmatpush1.xpose.msra.mxu0 %v54
    %118 = vmatprep.subr.mxu0 0.0
    %119 = vmatpush1.xpose.msra.mxu0 %v51
    %120 = vmatprep.subr.mxu0 0.0
    %121 = vmatpush1.xpose.msra.mxu0 %v48
    %122 = vmatprep.subr.mxu0 0.0
    %123 = vmatpush1.xpose.msra.mxu0 %v45
    %124 = vmatprep.subr.mxu0 0.0
    %125 = vmatpush2.xpose.msra.mxu0 0.0
    %126 = vmatprep.subr.mxu0 0.0
    %127 = vmatpush2.xpose.msra.mxu0 0.0
    %128 = vmatprep.subr.mxu0 0.0
    %129 = vmatpush2.xpose.msra.mxu0 0.0
    %130 = vmatprep.subr.mxu0 0.0
    %131 = vmatpush2.xpose.msra.mxu0 0.0
    %132 = vmatprep.subr.mxu0 0.0
    %133 = vmatpush2.xpose.msra.mxu0 0.0
    %134 = vmatprep.subr.mxu0 0.0
    %135 = vmatpush2.xpose.msra.mxu0 0.0
    %136 = vmatprep.subr.mxu0 0.0
    %137 = vmatpush2.xpose.msra.mxu0 0.0
    %138 = vmatprep.subr.mxu0 0.0
    %139 = vmatpush2.xpose.msra.mxu0 0.0
    %140 = vmatprep.subr.mxu0 0.0
    %141 = vmatpush2.xpose.msra.mxu0 0.0
    %142 = vmatprep.subr.mxu0 0.0
    %143 = vmatpush2.xpose.msra.mxu0 0.0
    %144 = vmatprep.subr.mxu0 0.0
    %145 = vmatpush2.xpose.msra.mxu0 0.0
    %146 = vmatprep.subr.mxu0 0.0
    %147 = vmatpush2.xpose.msra.mxu0 0.0
    %148 = vmatprep.subr.mxu0 0.0
    %149 = vmatpush2.xpose.msra.mxu0 0.0
    %150 = vmatprep.subr.mxu0 0.0
    %151 = vmatpush2.xpose.msra.mxu0 0.0
    %152 = vmatprep.subr.mxu0 0.0
    %153 = vmatpush2.xpose.msra.mxu0 0.0
    %154 = vmatprep.subr.mxu0 0.0
    %155 = vmatpush2.xpose.msra.mxu0 0.0
    %156 = vmatprep.mubr.f32.mxu0 0.0
    %157 = vmatmul.mubr.f32.gmra.mxu0 %v39
    %v158 = vpop.f32.mrf.mxu0
    %v159 = vadd.f32 0.0, %v158
    %v160 = vpop.f32.mrf.mxu0
    %161 = vmatprep.mubr.f32.mxu0 0.0
    %162 = vmatmul.mubr.f32.gmra.mxu0 %v42
    %v163 = vpop.f32.mrf.mxu0
    %v164 = vadd.f32 0.0, %v163
    %v165 = vpop.f32.mrf.mxu0
    %166 = vdwg.mxu0
    %v167 = vmul.f32 %v159, 2.0
    %v168 = vmul.f32 %v164, 2.0
    %v170 = vlaneseq
    %v171 = vshrl.u32 %v170, 7
    %v172 = vsub.s32 0, %v171
    %v173 = vrot.slane %v36, %v172
    %v175 = vsub.f32 %v167, %v173
    %v176 = vsub.f32 %v168, %v173
    %177 = vmax.xlane.f32.xlu0 %v175
    %v178 = vpop.xlane.xlu0 %177
    %179 = vmax.xlane.f32.xlu0 %v176
    %v180 = vpop.xlane.xlu0 %179
    %v181 = vlaneseq
    %v182 = vand.u32 %v181, 127
    %vm183 = vcmp.eq.f32.partialorder %v175, %v178
    %vm184 = vcmp.eq.f32.partialorder %v176, %v180
    %v185 = vsel %vm183, %v182, 128
    %v186 = vsel %vm184, %v182, 128
    %v187 = vand.u32 %v185, 65535
    %v188 = vshra.s32 %v185, 16
    %v189 = vcvt.s32.f32 %v187
    %v190 = vcvt.s32.f32 %v188
    %191 = vmin.xlane.f32.xlu0 %v190
    %v192 = vpop.xlane.xlu0 %191
    %vm193 = vcmp.eq.f32.partialorder %v190, %v192
    %v194 = vsel %vm193, %v189, inf
    %195 = vmin.xlane.f32.xlu0 %v194
    %v196 = vpop.xlane.xlu0 %195
    %v197 = vcvt.f32.s32 %v196
    %v198 = vcvt.f32.s32 %v192
    %v199 = vshll.u32 %v198, 16
    %v200 = vadd.s32 %v199, %v197
    %v201 = vand.u32 %v186, 65535
    %v202 = vshra.s32 %v186, 16
    %v203 = vcvt.s32.f32 %v201
    %v204 = vcvt.s32.f32 %v202
    %205 = vmin.xlane.f32.xlu0 %v204
    %v206 = vpop.xlane.xlu0 %205
    %vm207 = vcmp.eq.f32.partialorder %v204, %v206
    %v208 = vsel %vm207, %v203, inf
    %209 = vmin.xlane.f32.xlu0 %v208
    %v210 = vpop.xlane.xlu0 %209
    %v211 = vcvt.f32.s32 %v210
    %v212 = vcvt.f32.s32 %v206
    %v213 = vshll.u32 %v212, 16
    %v214 = vadd.s32 %v213, %v211
    %v215 = vmul.f32 %v18, %v18
    %v216 = vmul.f32 %v19, %v19
    %v217 = vsel %vm37, %v215, 0.0
    %218 = vadd.xlane.f32.xlu0 %v217
    %v219 = vpop.xlane.xlu0 %218
    %v220 = vsel %vm37, %v216, 0.0
    %221 = vadd.xlane.f32.xlu0 %v220
    %v222 = vpop.xlane.xlu0 %221
    %v223 = vsub.f32 %v219, %v178
    %v224 = vsub.f32 %v222, %v180
    %v225 = vlaneseq
    %v226 = vshrl.u32 %v225, 7
    %v227 = vsub.s32 %v182, %v226
    %v228 = vrot.slane %v200, %v227
    %v229 = vadd.s32 %v182, 4294967288
    %v230 = vlaneseq
    %v231 = vshrl.u32 %v230, 7
    %v232 = vsub.s32 %v229, %v231
    %v233 = vrot.slane %v214, %v232
    %vm234 = vcmask 130112
    %v235 = vsel %vm234, %v233, %v228
    %vm236 = vcmask 122880
    %237 = vst.msk [vmem:[#allocation2] sm:$0x1] %vm236, %v235
    %v240 = vlaneseq
    %v241 = vshrl.u32 %v240, 7
    %v242 = vsub.s32 %v182, %v241
    %v243 = vrot.slane %v223, %v242
    %v244 = vlaneseq
    %v245 = vshrl.u32 %v244, 7
    %v246 = vsub.s32 %v229, %v245
    %v247 = vrot.slane %v224, %v246
    %v248 = vsel %vm234, %v247, %v243
    %250 = vst.msk [vmem:[#allocation4] sm:$0x1] %vm236, %v248
    // Predicated region
    $region14: #{tpu_custom_call.1} parent=1 // pred_check
      _
    $region15: #{tpu_custom_call.1} parent=1 // pred_check_branch
      %252 = sbr.rel (0) target = $region17
    $region16: #{tpu_custom_call.1} parent=1 // pred_region
      %s254 = ssub.s32 16, 16
      %255 = vsyncadd [#allocation3], %s254
      %s257 = sshll.u32 [#allocation2], 4
      %s258 = int_to_ptr.vmem [resolvable:$true] %s257
      %260 = dma.vmem_to_hbm [thread:$0]  %s258, 16, %s3, [#allocation3]
    $region17: #{tpu_custom_call.1} parent=1 // pred_fallthru
      _
    // Predicated region
    $region18: #{tpu_custom_call.1} parent=1 // pred_check
      _
    $region19: #{tpu_custom_call.1} parent=1 // pred_check_branch
      %262 = sbr.rel (0) target = $region21
    $region20: #{tpu_custom_call.1} parent=1 // pred_region
      %s264 = ssub.s32 16, 16
      %265 = vsyncadd [#allocation5], %s264
      %s267 = sshll.u32 [#allocation4], 4
      %s268 = int_to_ptr.vmem [resolvable:$true] %s267
      %270 = dma.vmem_to_hbm [thread:$0]  %s268, 16, %s4, [#allocation5]
    $region21: #{tpu_custom_call.1} parent=1 // pred_fallthru
      _
    // Predicated region
    $region22: #{tpu_custom_call.1} parent=1 // pred_check
      _
    $region23: #{tpu_custom_call.1} parent=1 // pred_check_branch
      %272 = sbr.rel (0) target = $region25
    $region24: #{tpu_custom_call.1} parent=1 // pred_region
      %273 = dma.done [#allocation3], 16
    $region25: #{tpu_custom_call.1} parent=1 // pred_fallthru
      _
    // Predicated region
    $region26: #{tpu_custom_call.1} parent=1 // pred_check
      _
    $region27: #{tpu_custom_call.1} parent=1 // pred_check_branch
      %275 = sbr.rel (0) target = $region29
    $region28: #{tpu_custom_call.1} parent=1 // pred_region
      %276 = dma.done [#allocation5], 16
    $region29: #{tpu_custom_call.1} parent=1 // pred_fallthru
      _
    %277 = vsyncpa [#allocation3], 1
    %278 = vsyncpa [#allocation5], 1

</llo_original>
